<compile_context>
chip_gen: v5e
topology: v5e:2x2
jax: 0.10.0
libtpu: 0.0.40
codegen_flags: <defaults>
</compile_context>

<pallas_src>
import math
from functools import partial

import jax
import jax.numpy as jnp
from jax.experimental import pallas as pl
from jax.experimental.pallas import tpu as pltpu

LANE = 128      # pad hidden/output feature dims to multiples of this (lane-dense stores)
SUBLANE = 16    # batch-tile granularity (covers bf16 (16,128) sublane packing)


def _round_up(n, m):
    return ((n + m - 1) // m) * m


def _pad2d(a, rows, cols):
    return jnp.pad(a, ((0, rows - a.shape[0]), (0, cols - a.shape[1])))


def make_projector_kernel(hidden_layers):
    """Ref layout:
         [x_flat, stats_flat, Wx1, W1b, b1,
          (W_i, b_i) for i in 1..hidden_layers-1,
          W_out, out_ref]
       The circular conv is already folded into Wx1, so the whole forward is a chain of
       matmuls (+bias, ReLU) on lane-dense tiles; accumulate in f32, MXU inputs in the
       operands' dtype (bf16 by default)."""
    def kernel(*refs):
        x_ref, stats_ref, wx1_ref, w1b_ref, b1_ref = refs[:5]
        out_ref = refs[-1]

        # first Linear on concat([conv(x), stats]); conv folded into Wx1 (exact identity)
        h = (jnp.dot(x_ref[...], wx1_ref[...], preferred_element_type=jnp.float32)
             + jnp.dot(stats_ref[...], w1b_ref[...], preferred_element_type=jnp.float32)
             + b1_ref[...])
        h = jnp.maximum(h, 0.0)

        # remaining hidden Linear+ReLU layers
        for i in range(hidden_layers - 1):
            w_ref = refs[5 + 2 * i]
            b_ref = refs[6 + 2 * i]
            h = jnp.dot(h.astype(w_ref.dtype), w_ref[...],
                        preferred_element_type=jnp.float32) + b_ref[...]
            h = jnp.maximum(h, 0.0)

        # final Linear (no bias)
        wout_ref = refs[5 + 2 * (hidden_layers - 1)]
        out_ref[...] = jnp.dot(h.astype(wout_ref.dtype), wout_ref[...],
                               preferred_element_type=jnp.float32)

    return kernel


@partial(jax.jit,
         static_argnames=("hidden_layers", "kernel_size", "tile_b", "compute_dtype"))
def projector_forward(x, stats, params, *, hidden_layers, kernel_size=3,
                      tile_b=128, compute_dtype=jnp.bfloat16):
    """x: [B, S, E], stats: [B, 1, E] -> [B, output_dim]"""
    B, S, E = x.shape
    w_conv = params["conv_w"].astype(jnp.float32)          # [S, K]
    K = w_conv.shape[1]
    pad = kernel_size // 2

    # ---- fold circular Conv1d into the first Linear (runs under jit, tiny) ----
    # conv_out[b, e] = sum_{s,k} x[b, s, (e + k - pad) mod E] * w_conv[s, k]
    # => (conv_out @ W1a)[b, h] = x_flat[b] @ Wx1[:, h],
    #    Wx1[s*E + e, h] = sum_k w_conv[s, k] * W1a[(e - k + pad) mod E, h]
    w1 = params["lin_w"][0].astype(jnp.float32)             # [2E, H0]
    w1a, w1b = w1[:E], w1[E:]
    rolls = jnp.stack([jnp.roll(w1a, k - pad, axis=0) for k in range(K)], axis=0)  # [K,E,H0]
    wx1 = jnp.einsum("sk,keh->seh", w_conv, rolls).reshape(S * E, w1.shape[1])

    hdims = [params["lin_w"][i].shape[1] for i in range(hidden_layers)]
    out_dim = params["out_w"].shape[1]
    hdims_p = [_round_up(h, LANE) for h in hdims]
    out_p = _round_up(out_dim, LANE)

    # ---- batch tiling / padding ----
    tile = min(tile_b, _round_up(B, SUBLANE))
    Bp = _round_up(B, tile)
    grid = (Bp // tile,)

    cdt = compute_dtype
    x_flat = jnp.pad(x.reshape(B, S * E), ((0, Bp - B), (0, 0))).astype(cdt)
    stats_flat = jnp.pad(stats.reshape(B, E), ((0, Bp - B), (0, 0))).astype(cdt)

    wx1_p = _pad2d(wx1, S * E, hdims_p[0]).astype(cdt)
    w1b_p = _pad2d(w1b, E, hdims_p[0]).astype(cdt)
    b1_p = _pad2d(params["lin_b"][0].reshape(1, -1).astype(jnp.float32), 1, hdims_p[0])

    operands = [x_flat, stats_flat, wx1_p, w1b_p, b1_p]
    in_specs = [
        pl.BlockSpec((tile, S * E), lambda i: (i, 0)),   # batch-tiled, double-buffered
        pl.BlockSpec((tile, E), lambda i: (i, 0)),
        pl.BlockSpec(wx1_p.shape, lambda i: (0, 0)),     # weights: VMEM-resident
        pl.BlockSpec(w1b_p.shape, lambda i: (0, 0)),
        pl.BlockSpec(b1_p.shape, lambda i: (0, 0)),
    ]

    for li in range(1, hidden_layers):
        wi = _pad2d(params["lin_w"][li].astype(jnp.float32),
                    hdims_p[li - 1], hdims_p[li]).astype(cdt)
        bi = _pad2d(params["lin_b"][li].reshape(1, -1).astype(jnp.float32), 1, hdims_p[li])
        operands += [wi, bi]
        in_specs += [pl.BlockSpec(wi.shape, lambda i: (0, 0)),
                     pl.BlockSpec(bi.shape, lambda i: (0, 0))]

    wout = _pad2d(params["out_w"].astype(jnp.float32), hdims_p[-1], out_p).astype(cdt)
    operands.append(wout)
    in_specs.append(pl.BlockSpec(wout.shape, lambda i: (0, 0)))

    # ---- VMEM budget (raise scoped limit only if needed; cap at v7x physical 64 MiB) ----
    weight_bytes = sum(math.prod(o.shape) * jnp.dtype(o.dtype).itemsize
                       for o in operands[2:])
    itemsize = jnp.dtype(cdt).itemsize
    tile_bytes = 2 * tile * (S * E + E) * itemsize + 2 * tile * out_p * 4
    act_bytes = 2 * tile * max(hdims_p) * 4
    need = weight_bytes + tile_bytes + act_bytes
    vmem_limit = None
    if need > 32 * 2**20:
        vmem_limit = int(min(64 * 2**20, _round_up(int(need * 1.25), 2**20)))

    out = pl.pallas_call(
        make_projector_kernel(hidden_layers),
        out_shape=jax.ShapeDtypeStruct((Bp, out_p), jnp.float32),
        grid=grid,
        in_specs=in_specs,
        out_specs=pl.BlockSpec((tile, out_p), lambda i: (i, 0)),
        compiler_params=pltpu.CompilerParams(
            dimension_semantics=("parallel",),      # megacore sharding on v7x
            vmem_limit_bytes=vmem_limit),
    )(*operands)

    return out[:B, :out_dim]


def projector_reference(x, stats, params, *, hidden_layers):
    """Pure-JAX reference matching the PyTorch forward exactly (f32)."""
    B, S, E = x.shape
    w_conv = params["conv_w"]
    K = w_conv.shape[1]
    xp = jnp.concatenate([x[..., -1:], x, x[..., :1]], axis=-1)   # circular pad 1
    conv = jnp.zeros((B, E), jnp.float32)
    for k in range(K):
        conv = conv + jnp.einsum("bse,s->be", xp[..., k:k + E], w_conv[:, k])
    z = jnp.concatenate([conv, stats.reshape(B, E)], axis=-1)     # view(B, -1) of cat
    h = z
    for i in range(hidden_layers):
        h = jnp.maximum(h @ params["lin_w"][i] + params["lin_b"][i], 0.0)
    return h @ params["out_w"]


if __name__ == "__main__":
    # Projector(enc_in=4, seq_len=8, hidden_dims=[32, 32], hidden_layers=2,
    #           output_dim=4, kernel_size=3)
    B, S, E = 2, 8, 4
    hidden_dims = [32, 32]
    hidden_layers = 2
    output_dim = 4
    kernel_size = 3

    key = jax.random.PRNGKey(0)
    keys = jax.random.split(key, 10)

    x = jax.random.normal(keys[0], (B, S, E), jnp.float32)
    stats = jax.random.normal(keys[1], (B, 1, E), jnp.float32)

    # deterministic synthetic parameters (Linear weights stored pre-transposed as [in, out])
    params = {
        "conv_w": 0.2 * jax.random.normal(keys[2], (S, kernel_size), jnp.float32),
        "lin_w": [
            0.2 * jax.random.normal(keys[3], (2 * E, hidden_dims[0]), jnp.float32),
            0.2 * jax.random.normal(keys[4], (hidden_dims[0], hidden_dims[1]), jnp.float32),
        ],
        "lin_b": [
            0.1 * jax.random.normal(keys[5], (hidden_dims[0],), jnp.float32),
            0.1 * jax.random.normal(keys[6], (hidden_dims[1],), jnp.float32),
        ],
        "out_w": 0.2 * jax.random.normal(keys[7], (hidden_dims[-1], output_dim), jnp.float32),
    }

    y_ref = projector_reference(x, stats, params, hidden_layers=hidden_layers)

    # exactness check: f32 compute path
    y32 = projector_forward(x, stats, params, hidden_layers=hidden_layers,
                            kernel_size=kernel_size, compute_dtype=jnp.float32)
    y32 = jax.block_until_ready(y32)
    assert y32.shape == (B, output_dim)
    assert jnp.allclose(y32, y_ref, atol=1e-4, rtol=1e-4), "f32 mismatch vs reference"

    # fast path: bf16 MXU inputs, f32 accumulation (looser tolerance)
    ybf = projector_forward(x, stats, params, hidden_layers=hidden_layers,
                            kernel_size=kernel_size, compute_dtype=jnp.bfloat16)
    ybf = jax.block_until_ready(ybf)
    assert jnp.allclose(ybf, y_ref, atol=5e-2, rtol=5e-2), "bf16 mismatch vs reference"

    # multi-tile batch: exercises the batch grid (pipelined tiles, padded batch)
    B2 = 300
    x2 = jax.random.normal(keys[8], (B2, S, E), jnp.float32)
    stats2 = jax.random.normal(keys[9], (B2, 1, E), jnp.float32)
    y2 = projector_forward(x2, stats2, params, hidden_layers=hidden_layers,
                           kernel_size=kernel_size, tile_b=128,
                           compute_dtype=jnp.bfloat16)
    y2 = jax.block_until_ready(y2)
    y2_ref = projector_reference(x2, stats2, params, hidden_layers=hidden_layers)
    assert y2.shape == (B2, output_dim)
    assert jnp.allclose(y2, y2_ref, atol=5e-2, rtol=5e-2), "batched mismatch vs reference"

    print("KERNEL_OK")
</pallas_src>

<mosaic_0001>
module attributes {stable_mosaic.version = 11 : i64} {
  func.func @kernel(%arg0: i32, %arg1: memref<16x32xf32, #tpu.memory_space<vmem>>, %arg2: memref<16x4xf32, #tpu.memory_space<vmem>>, %arg3: memref<32x128xf32, #tpu.memory_space<vmem>>, %arg4: memref<4x128xf32, #tpu.memory_space<vmem>>, %arg5: memref<1x128xf32, #tpu.memory_space<vmem>>, %arg6: memref<128x128xf32, #tpu.memory_space<vmem>>, %arg7: memref<1x128xf32, #tpu.memory_space<vmem>>, %arg8: memref<128x128xf32, #tpu.memory_space<vmem>>, %arg9: memref<16x128xf32, #tpu.memory_space<vmem>>) attributes {dimension_semantics = [#tpu.dimension_semantics<parallel>], iteration_bounds = array<i64: 1>, scalar_prefetch = 0 : i64, scratch_operands = 0 : i64, tpu.core_type = #tpu.core_type<tc>, window_params = [{transform_indices = @transform_0, window_bounds = array<i64: 16, 32>}, {transform_indices = @transform_1, window_bounds = array<i64: 16, 4>}, {pipeline_mode = #tpu.pipeline_mode<synchronous>, transform_indices = @transform_2, window_bounds = array<i64: 32, 128>}, {pipeline_mode = #tpu.pipeline_mode<synchronous>, transform_indices = @transform_3, window_bounds = array<i64: 4, 128>}, {pipeline_mode = #tpu.pipeline_mode<synchronous>, transform_indices = @transform_4, window_bounds = array<i64: 1, 128>}, {pipeline_mode = #tpu.pipeline_mode<synchronous>, transform_indices = @transform_5, window_bounds = array<i64: 128, 128>}, {pipeline_mode = #tpu.pipeline_mode<synchronous>, transform_indices = @transform_6, window_bounds = array<i64: 1, 128>}, {pipeline_mode = #tpu.pipeline_mode<synchronous>, transform_indices = @transform_7, window_bounds = array<i64: 128, 128>}, {transform_indices = @transform_8, window_bounds = array<i64: 16, 128>}]} {
    %c0 = arith.constant 0 : index
    %c0_0 = arith.constant 0 : index
    %0 = vector.load %arg1[%c0, %c0_0] : memref<16x32xf32, #tpu.memory_space<vmem>>, vector<16x32xf32>
    %c0_1 = arith.constant 0 : index
    %c0_2 = arith.constant 0 : index
    %1 = vector.load %arg3[%c0_1, %c0_2] : memref<32x128xf32, #tpu.memory_space<vmem>>, vector<32x128xf32>
    %cst = arith.constant dense<0.000000e+00> : vector<16x128xf32>
    %2 = tpu.matmul %0, %1, %cst {dimension_numbers = #tpu.dot_dimension_numbers<[1], [0], [0], [1], [0, 0, 1, 1], [], []>} : vector<16x32xf32>, vector<32x128xf32>, vector<16x128xf32> -> vector<16x128xf32>
    %c0_3 = arith.constant 0 : index
    %c0_4 = arith.constant 0 : index
    %3 = vector.load %arg2[%c0_3, %c0_4] : memref<16x4xf32, #tpu.memory_space<vmem>>, vector<16x4xf32>
    %c0_5 = arith.constant 0 : index
    %c0_6 = arith.constant 0 : index
    %4 = vector.load %arg4[%c0_5, %c0_6] : memref<4x128xf32, #tpu.memory_space<vmem>>, vector<4x128xf32>
    %cst_7 = arith.constant dense<0.000000e+00> : vector<16x128xf32>
    %5 = tpu.matmul %3, %4, %cst_7 {dimension_numbers = #tpu.dot_dimension_numbers<[1], [0], [0], [1], [0, 0, 1, 1], [], []>} : vector<16x4xf32>, vector<4x128xf32>, vector<16x128xf32> -> vector<16x128xf32>
    %6 = arith.addf %2, %5 : vector<16x128xf32>
    %c0_8 = arith.constant 0 : index
    %c0_9 = arith.constant 0 : index
    %7 = vector.load %arg5[%c0_8, %c0_9] : memref<1x128xf32, #tpu.memory_space<vmem>>, vector<1x128xf32>
    %8 = vector.broadcast %7 : vector<1x128xf32> to vector<16x128xf32>
    %9 = arith.addf %6, %8 : vector<16x128xf32>
    %cst_10 = arith.constant 0.000000e+00 : f32
    %10 = vector.broadcast %cst_10 : f32 to vector<16x128xf32>
    %11 = arith.maximumf %9, %10 : vector<16x128xf32>
    %c0_11 = arith.constant 0 : index
    %c0_12 = arith.constant 0 : index
    %12 = vector.load %arg6[%c0_11, %c0_12] : memref<128x128xf32, #tpu.memory_space<vmem>>, vector<128x128xf32>
    %cst_13 = arith.constant dense<0.000000e+00> : vector<16x128xf32>
    %13 = tpu.matmul %11, %12, %cst_13 {dimension_numbers = #tpu.dot_dimension_numbers<[1], [0], [0], [1], [0, 0, 1, 1], [], []>} : vector<16x128xf32>, vector<128x128xf32>, vector<16x128xf32> -> vector<16x128xf32>
    %c0_14 = arith.constant 0 : index
    %c0_15 = arith.constant 0 : index
    %14 = vector.load %arg7[%c0_14, %c0_15] : memref<1x128xf32, #tpu.memory_space<vmem>>, vector<1x128xf32>
    %15 = vector.broadcast %14 : vector<1x128xf32> to vector<16x128xf32>
    %16 = arith.addf %13, %15 : vector<16x128xf32>
    %cst_16 = arith.constant 0.000000e+00 : f32
    %17 = vector.broadcast %cst_16 : f32 to vector<16x128xf32>
    %18 = arith.maximumf %16, %17 : vector<16x128xf32>
    %c0_17 = arith.constant 0 : index
    %c0_18 = arith.constant 0 : index
    %19 = vector.load %arg8[%c0_17, %c0_18] : memref<128x128xf32, #tpu.memory_space<vmem>>, vector<128x128xf32>
    %cst_19 = arith.constant dense<0.000000e+00> : vector<16x128xf32>
    %20 = tpu.matmul %18, %19, %cst_19 {dimension_numbers = #tpu.dot_dimension_numbers<[1], [0], [0], [1], [0, 0, 1, 1], [], []>} : vector<16x128xf32>, vector<128x128xf32>, vector<16x128xf32> -> vector<16x128xf32>
    %c0_20 = arith.constant 0 : index
    %c0_21 = arith.constant 0 : index
    %21 = vector.load %arg9[%c0_20, %c0_21] : memref<16x128xf32, #tpu.memory_space<vmem>>, vector<16x128xf32>
    tpu.vector_store %arg9[%c0_20, %c0_21], %20 {strides = array<i32>} : memref<16x128xf32, #tpu.memory_space<vmem>>, vector<16x128xf32>,
    return
  }
  func.func @transform_0(%arg0: i32) -> (i32, i32) {
    %c0_i32 = arith.constant 0 : i32
    %c0_i32_0 = arith.constant 0 : i32
    return %arg0, %c0_i32 : i32, i32
  }
  func.func @transform_1(%arg0: i32) -> (i32, i32) {
    %c0_i32 = arith.constant 0 : i32
    %c0_i32_0 = arith.constant 0 : i32
    return %arg0, %c0_i32 : i32, i32
  }
  func.func @transform_2(%arg0: i32) -> (i32, i32) {
    %c0_i32 = arith.constant 0 : i32
    %c0_i32_0 = arith.constant 0 : i32
    %c0_i32_1 = arith.constant 0 : i32
    return %c0_i32, %c0_i32_0 : i32, i32
  }
  func.func @transform_3(%arg0: i32) -> (i32, i32) {
    %c0_i32 = arith.constant 0 : i32
    %c0_i32_0 = arith.constant 0 : i32
    %c0_i32_1 = arith.constant 0 : i32
    return %c0_i32, %c0_i32_0 : i32, i32
  }
  func.func @transform_4(%arg0: i32) -> (i32, i32) {
    %c0_i32 = arith.constant 0 : i32
    %c0_i32_0 = arith.constant 0 : i32
    %c0_i32_1 = arith.constant 0 : i32
    return %c0_i32, %c0_i32_0 : i32, i32
  }
  func.func @transform_5(%arg0: i32) -> (i32, i32) {
    %c0_i32 = arith.constant 0 : i32
    %c0_i32_0 = arith.constant 0 : i32
    %c0_i32_1 = arith.constant 0 : i32
    return %c0_i32, %c0_i32_0 : i32, i32
  }
  func.func @transform_6(%arg0: i32) -> (i32, i32) {
    %c0_i32 = arith.constant 0 : i32
    %c0_i32_0 = arith.constant 0 : i32
    %c0_i32_1 = arith.constant 0 : i32
    return %c0_i32, %c0_i32_0 : i32, i32
  }
  func.func @transform_7(%arg0: i32) -> (i32, i32) {
    %c0_i32 = arith.constant 0 : i32
    %c0_i32_0 = arith.constant 0 : i32
    %c0_i32_1 = arith.constant 0 : i32
    return %c0_i32, %c0_i32_0 : i32, i32
  }
  func.func @transform_8(%arg0: i32) -> (i32, i32) {
    %c0_i32 = arith.constant 0 : i32
    %c0_i32_0 = arith.constant 0 : i32
    return %arg0, %c0_i32 : i32, i32
  }
}

</mosaic_0001>

<llo_original>
// kernel: projector_forward.1
$region0: #{projector_forward.1}
  #allocation0 [shape = 'u32[]', space=smem, size = 0x4, offset = 0x4, fixed_abs, tag = 'smem constant byte address 0x4 - core index']
  #allocation1 [shape = 'u32[72,128]{1,0:T(1,128)}', space=vmem, size = 0x9000, scoped, tag = 'internal scratch']
  %s0 = inlined_call_operand.vmem [shape: f32[16,32], index: 0, kind: input, shape index: {}]
  %s1 = inlined_call_operand.vmem [shape: f32[16,4], index: 1, kind: input, shape index: {}]
  %s2 = inlined_call_operand.vmem [shape: f32[32,128], index: 2, kind: input, shape index: {}]
  %s3 = inlined_call_operand.vmem [shape: f32[4,128], index: 3, kind: input, shape index: {}]
  %s4 = inlined_call_operand.vmem [shape: f32[1,128], index: 4, kind: input, shape index: {}]
  %s5 = inlined_call_operand.vmem [shape: f32[128,128], index: 5, kind: input, shape index: {}]
  %s6 = inlined_call_operand.vmem [shape: f32[1,128], index: 6, kind: input, shape index: {}]
  %s7 = inlined_call_operand.vmem [shape: f32[128,128], index: 7, kind: input, shape index: {}]
  %s8 = inlined_call_operand.vmem [shape: f32[16,128], index: 8, kind: output, shape index: {}]
  %s9 = sld [smem:[#allocation0]]
  $region42: #{projector_forward.1} parent=0
    _
  %s11 = ssub.s32 1, %s9
  %s12 = scalar_select 0, %s11, %s9
  // Predicated region
  $region2: #{projector_forward.1} parent=0 // pred_check
    _
  $region3: #{projector_forward.1} parent=0 // pred_check_branch
    %14 = sbr.rel (0) target = $region5
  $region4: #{projector_forward.1} parent=0 // pred_region
    _
  $region5: #{projector_forward.1} parent=0 // pred_fallthru
    _
  // Predicated region
  $region6: #{projector_forward.1} parent=0 // pred_check
    _
  $region7: #{projector_forward.1} parent=0 // pred_check_branch
    %16 = sbr.rel (0) target = $region9
  $region8: #{projector_forward.1} parent=0 // pred_region
    _
  $region9: #{projector_forward.1} parent=0 // pred_fallthru
    _
  // Predicated region
  $region10: #{projector_forward.1} parent=0 // pred_check
    _
  $region11: #{projector_forward.1} parent=0 // pred_check_branch
    %18 = sbr.rel (0) target = $region13
  $region12: #{projector_forward.1} parent=0 // pred_region
    _
  $region13: #{projector_forward.1} parent=0 // pred_fallthru
    _
  // Predicated region
  $region14: #{projector_forward.1} parent=0 // pred_check
    _
  $region15: #{projector_forward.1} parent=0 // pred_check_branch
    %20 = sbr.rel (0) target = $region17
  $region16: #{projector_forward.1} parent=0 // pred_region
    _
  $region17: #{projector_forward.1} parent=0 // pred_fallthru
    _
  // Predicated region
  $region18: #{projector_forward.1} parent=0 // pred_check
    _
  $region19: #{projector_forward.1} parent=0 // pred_check_branch
    %22 = sbr.rel (0) target = $region21
  $region20: #{projector_forward.1} parent=0 // pred_region
    _
  $region21: #{projector_forward.1} parent=0 // pred_fallthru
    _
  // Predicated region
  $region22: #{projector_forward.1} parent=0 // pred_check
    _
  $region23: #{projector_forward.1} parent=0 // pred_check_branch
    %24 = sbr.rel (0) target = $region25
  $region24: #{projector_forward.1} parent=0 // pred_region
    _
  $region25: #{projector_forward.1} parent=0 // pred_fallthru
    _
  // Predicated region
  $region26: #{projector_forward.1} parent=0 // pred_check
    _
  $region27: #{projector_forward.1} parent=0 // pred_check_branch
    %26 = sbr.rel (0) target = $region29
  $region28: #{projector_forward.1} parent=0 // pred_region
    _
  $region29: #{projector_forward.1} parent=0 // pred_fallthru
    _
  // Predicated region
  $region30: #{projector_forward.1} parent=0 // pred_check
    _
  $region31: #{projector_forward.1} parent=0 // pred_check_branch
    %28 = sbr.rel (0) target = $region33
  $region32: #{projector_forward.1} parent=0 // pred_region
    _
  $region33: #{projector_forward.1} parent=0 // pred_fallthru
    _
  %v29 = vld [vmem:[%s0] sm:$0xff]
  %v30 = vld [vmem:[%s0 + $0x8] sm:$0xff]
  %v31 = vld [vmem:[%s2] sm:$0xff]
  %v32 = vld [vmem:[%s2 + $0x8] sm:$0xff]
  %v33 = vld [vmem:[%s2 + $0x10] sm:$0xff]
  %v34 = vld [vmem:[%s2 + $0x18] sm:$0xff]
  %v35 = vld [vmem:[%s1] sm:$0xff]
  %v36 = vld [vmem:[%s1 + $0x8] sm:$0xff]
  %v37 = vld [vmem:[%s3] sm:$0xf]
  %vm38 = vcmask 31744
  %v40 = vsel %vm38, %v35, 0
  %v43 = vsel %vm38, %v36, 0
  %vm45 = vcmask 1043456
  %v47 = vsel %vm45, %v37, 0
  %49 = vmatpush.msra.mxu0 0.0
  %50 = vmatpush.msra.mxu0 0.0
  %51 = vmatpush.msra.mxu0 0.0
  %52 = vmatpush.msra.mxu0 0.0
  %53 = vmatpush.msra.mxu0 0.0
  %54 = vmatpush.msra.mxu0 0.0
  %55 = vmatpush.msra.mxu0 0.0
  %56 = vmatpush.msra.mxu0 0.0
  %57 = vmatpush.msra.mxu0 0.0
  %58 = vmatpush.msra.mxu0 0.0
  %59 = vmatpush.msra.mxu0 0.0
  %60 = vmatpush.msra.mxu0 0.0
  %61 = vmatpush.msra.mxu0 0.0
  %62 = vmatpush.msra.mxu0 0.0
  %63 = vmatpush.msra.mxu0 0.0
  %64 = vmatpush.msra.mxu0 %v47
  %65 = vmatmul.f32.gmra.mxu0 %v40
  %v66 = vpop.f32.mrf.mxu0
  %v67 = vadd.f32 0.0, %v66
  %68 = vmatmul.f32.gmra.mxu0 %v43
  %v69 = vpop.f32.mrf.mxu0
  %v70 = vadd.f32 0.0, %v69
  %71 = vdwg.mxu0
  %vm72 = vcmask 261120
  %v74 = vsel %vm72, %v29, 0
  %v77 = vsel %vm72, %v30, 0
  %79 = vmatpush.msra.mxu0 0.0
  %80 = vmatpush.msra.mxu0 0.0
  %81 = vmatpush.msra.mxu0 0.0
  %82 = vmatpush.msra.mxu0 0.0
  %83 = vmatpush.msra.mxu0 0.0
  %84 = vmatpush.msra.mxu0 0.0
  %85 = vmatpush.msra.mxu0 0.0
  %86 = vmatpush.msra.mxu0 0.0
  %87 = vmatpush.msra.mxu0 0.0
  %88 = vmatpush.msra.mxu0 0.0
  %89 = vmatpush.msra.mxu0 0.0
  %90 = vmatpush.msra.mxu0 0.0
  %91 = vmatpush.msra.mxu0 %v34
  %92 = vmatpush.msra.mxu0 %v33
  %93 = vmatpush.msra.mxu0 %v32
  %94 = vmatpush.msra.mxu0 %v31
  %95 = vmatmul.f32.gmra.mxu0 %v74
  %v96 = vpop.f32.mrf.mxu0
  %v97 = vadd.f32 %v67, %v96
  %98 = vmatmul.f32.gmra.mxu0 %v77
  %v99 = vpop.f32.mrf.mxu0
  %v100 = vadd.f32 %v70, %v99
  %101 = vdwg.mxu0
  %v102 = vld [vmem:[%s4] sm:$0x1]
  %v104 = vperm.slane %v102, 0
  %v106 = vadd.f32 %v97, %v104
  %v107 = vadd.f32 %v100, %v104
  %v108 = vmax.f32 %v106, 0.0
  %v109 = vmax.f32 %v107, 0.0
  %v110 = vld [vmem:[%s5] sm:$0xff]
  %v111 = vld [vmem:[%s5 + $0x8] sm:$0xff]
  %v112 = vld [vmem:[%s5 + $0x10] sm:$0xff]
  %v113 = vld [vmem:[%s5 + $0x18] sm:$0xff]
  %v114 = vld [vmem:[%s5 + $0x20] sm:$0xff]
  %v115 = vld [vmem:[%s5 + $0x28] sm:$0xff]
  %v116 = vld [vmem:[%s5 + $0x30] sm:$0xff]
  %v117 = vld [vmem:[%s5 + $0x38] sm:$0xff]
  %v118 = vld [vmem:[%s5 + $0x40] sm:$0xff]
  %v119 = vld [vmem:[%s5 + $0x48] sm:$0xff]
  %v120 = vld [vmem:[%s5 + $0x50] sm:$0xff]
  %v121 = vld [vmem:[%s5 + $0x58] sm:$0xff]
  %v122 = vld [vmem:[%s5 + $0x60] sm:$0xff]
  %v123 = vld [vmem:[%s5 + $0x68] sm:$0xff]
  %v124 = vld [vmem:[%s5 + $0x70] sm:$0xff]
  %v125 = vld [vmem:[%s5 + $0x78] sm:$0xff]
  %v126 = vld [vmem:[%s6] sm:$0x1]
  %v128 = vperm.slane %v126, 0
  %130 = vmatpush.msra.mxu0 %v125
  %131 = vmatpush.msra.mxu0 %v124
  %132 = vmatpush.msra.mxu0 %v123
  %133 = vmatpush.msra.mxu0 %v122
  %134 = vmatpush.msra.mxu0 %v121
  %135 = vmatpush.msra.mxu0 %v120
  %136 = vmatpush.msra.mxu0 %v119
  %137 = vmatpush.msra.mxu0 %v118
  %138 = vmatpush.msra.mxu0 %v117
  %139 = vmatpush.msra.mxu0 %v116
  %140 = vmatpush.msra.mxu0 %v115
  %141 = vmatpush.msra.mxu0 %v114
  %142 = vmatpush.msra.mxu0 %v113
  %143 = vmatpush.msra.mxu0 %v112
  %144 = vmatpush.msra.mxu0 %v111
  %145 = vmatpush.msra.mxu0 %v110
  %146 = vmatmul.f32.gmra.mxu0 %v108
  %v147 = vpop.f32.mrf.mxu0
  %v148 = vadd.f32 %v128, %v147
  %149 = vmatmul.f32.gmra.mxu0 %v109
  %v150 = vpop.f32.mrf.mxu0
  %v151 = vadd.f32 %v128, %v150
  %152 = vdwg.mxu0
  %v153 = vmax.f32 %v148, 0.0
  %v154 = vmax.f32 %v151, 0.0
  %v155 = vld [vmem:[%s7] sm:$0xff]
  %v156 = vld [vmem:[%s7 + $0x8] sm:$0xff]
  %v157 = vld [vmem:[%s7 + $0x10] sm:$0xff]
  %v158 = vld [vmem:[%s7 + $0x18] sm:$0xff]
  %v159 = vld [vmem:[%s7 + $0x20] sm:$0xff]
  %v160 = vld [vmem:[%s7 + $0x28] sm:$0xff]
  %v161 = vld [vmem:[%s7 + $0x30] sm:$0xff]
  %v162 = vld [vmem:[%s7 + $0x38] sm:$0xff]
  %v163 = vld [vmem:[%s7 + $0x40] sm:$0xff]
  %v164 = vld [vmem:[%s7 + $0x48] sm:$0xff]
  %v165 = vld [vmem:[%s7 + $0x50] sm:$0xff]
  %v166 = vld [vmem:[%s7 + $0x58] sm:$0xff]
  %v167 = vld [vmem:[%s7 + $0x60] sm:$0xff]
  %v168 = vld [vmem:[%s7 + $0x68] sm:$0xff]
  %v169 = vld [vmem:[%s7 + $0x70] sm:$0xff]
  %v170 = vld [vmem:[%s7 + $0x78] sm:$0xff]
  %171 = vmatpush.msra.mxu0 %v170
  %172 = vmatpush.msra.mxu0 %v169
  %173 = vmatpush.msra.mxu0 %v168
  %174 = vmatpush.msra.mxu0 %v167
  %175 = vmatpush.msra.mxu0 %v166
  %176 = vmatpush.msra.mxu0 %v165
  %177 = vmatpush.msra.mxu0 %v164
  %178 = vmatpush.msra.mxu0 %v163
  %179 = vmatpush.msra.mxu0 %v162
  %180 = vmatpush.msra.mxu0 %v161
  %181 = vmatpush.msra.mxu0 %v160
  %182 = vmatpush.msra.mxu0 %v159
  %183 = vmatpush.msra.mxu0 %v158
  %184 = vmatpush.msra.mxu0 %v157
  %185 = vmatpush.msra.mxu0 %v156
  %186 = vmatpush.msra.mxu0 %v155
  %187 = vmatmul.f32.gmra.mxu0 %v153
  %v188 = vpop.f32.mrf.mxu0
  %v189 = vadd.f32 0.0, %v188
  %190 = vmatmul.f32.gmra.mxu0 %v154
  %v191 = vpop.f32.mrf.mxu0
  %v192 = vadd.f32 0.0, %v191
  %193 = vdwg.mxu0
  %194 = vst [vmem:[%s8] sm:$0xff] %v189
  %195 = vst [vmem:[%s8 + $0x8] sm:$0xff] %v192
  // Predicated region
  $region34: #{projector_forward.1} parent=0 // pred_check
    _
  $region35: #{projector_forward.1} parent=0 // pred_check_branch
    %197 = sbr.rel (0) target = $region37
  $region36: #{projector_forward.1} parent=0 // pred_region
    _
  $region37: #{projector_forward.1} parent=0 // pred_fallthru
    _
  // Predicated region
  $region38: #{projector_forward.1} parent=0 // pred_check
    _
  $region39: #{projector_forward.1} parent=0 // pred_check_branch
    %199 = sbr.rel (0) target = $region41
  $region40: #{projector_forward.1} parent=0 // pred_region
    _
  $region41: #{projector_forward.1} parent=0 // pred_fallthru
    _

</llo_original>
